<compile_context>
chip_gen: v5e
topology: v5e:2x2
jax: 0.10.0
libtpu: 0.0.40
codegen_flags: <defaults>
</compile_context>

<pallas_src>
import functools

import jax
import jax.numpy as jnp
from jax.experimental import pallas as pl
from jax.experimental.pallas import tpu as pltpu


def _md_fused_kernel(x_ref, w_ref, b_ref, out_ref, *, n_components, isbias):
    """Single fused GEMM + masked softmax/exp epilogue, lane-dense output slab.

    x_ref:   [TB, ind]   (f32 or bf16)
    w_ref:   [ind, C]    where C = 3K (pi|mean|logsigma), or 2K when K == 1
    b_ref:   [1,  C]     f32 (zeros on the pi columns)
    out_ref: [TB, C]     f32 slab = [pi | mean | sigma] (or [mean | sigma], K==1)
    """
    K = n_components

    out = jnp.dot(x_ref[...], w_ref[...],
                  preferred_element_type=jnp.float32)          # [TB, C] f32
    if isbias:
        out = out + b_ref[...]                                 # [1, C] broadcast

    # Lane index over the output slab; all epilogue math is full-vreg VPU ops
    # selected by lane masks (no strided extracts / concatenates).
    lane = jax.lax.broadcasted_iota(jnp.int32, out.shape, dimension=1)

    if K == 1:
        # Slab = [mean | sigma]; the pi matmul was eliminated in the wrapper.
        e = jnp.exp(jnp.where(lane >= K, out, 0.0))
        out_ref[...] = jnp.where(lane < K, out, e)
    else:
        is_pi = lane < K
        is_sig = lane >= 2 * K
        # Row max over pi lanes only (others masked to -inf).
        m = jnp.max(jnp.where(is_pi, out, -jnp.inf), axis=1, keepdims=True)
        # One exp pass over the whole slab: shifted logits on pi lanes,
        # raw log-sigma on sigma lanes, 0 (harmless) on mean lanes.
        exp_arg = jnp.where(is_pi, out - m, jnp.where(is_sig, out, 0.0))
        e = jnp.exp(exp_arg)
        denom = jnp.sum(jnp.where(is_pi, e, 0.0), axis=1, keepdims=True)
        pi = e / denom                       # exact reciprocal: rows sum to 1
        out_ref[...] = jnp.where(is_pi, pi, jnp.where(is_sig, e, out))


# Grid-less path handles everything up to this many rows (lane-padded x + out
# slab ~ 8 MiB at B=8192, comfortably under every chip's scoped VMEM default).
_GRIDLESS_MAX_B = 8192
# Batch tile for the large-B path. Double-buffered lane-padded footprint at
# TB=4096 is ~8-9 MiB; vmem_limit_bytes below gives headroom on v5e.
_TB = 4096
_VMEM_LIMIT_BYTES = 32 * 1024 * 1024


def fuse_md_params(weight, pi_weight, bias, *, n_components, isbias=1):
    """Builds the fused [ind, 3K] weight and [1, 3K] bias ONCE per param set.

    For K == 1 the dead pi matmul is eliminated (fused matrix is just `weight`).
    """
    K = n_components
    weight = weight.astype(jnp.float32)
    if isbias and bias is not None:
        b = bias.astype(jnp.float32).reshape(2 * K)
    else:
        b = jnp.zeros((2 * K,), jnp.float32)

    if K == 1:
        w_fused = weight                                           # [ind, 2]
        b_fused = b.reshape(1, 2 * K)                              # [1, 2]
    else:
        w_fused = jnp.concatenate(
            [pi_weight.astype(jnp.float32), weight], axis=1)       # [ind, 3K]
        b_fused = jnp.concatenate(
            [jnp.zeros((K,), jnp.float32), b]).reshape(1, 3 * K)   # [1, 3K]
    return w_fused, b_fused


def md_network_apply(x, w_fused, b_fused, *, n_components, isbias=1,
                     bf16_inputs=False):
    """x: [B, ind]; (w_fused, b_fused) from fuse_md_params."""
    B, ind = x.shape
    K = n_components
    C = w_fused.shape[1]
    x = x.astype(jnp.float32)

    kernel = functools.partial(_md_fused_kernel, n_components=K, isbias=isbias)

    if B > _GRIDLESS_MAX_B:
        # Large-B path: tile over B only, weights/bias resident across steps.
        # Batch is zero-padded to a multiple of _TB (padded rows sliced off),
        # so odd B never falls back to the whole-array-in-VMEM path.
        x_t, w_t = x, w_fused
        if bf16_inputs:
            # HBM-bound regime: halve read traffic; accumulation stays f32.
            x_t = x_t.astype(jnp.bfloat16)
            w_t = w_t.astype(jnp.bfloat16)
        n_tiles = pl.cdiv(B, _TB)
        Bp = n_tiles * _TB
        if Bp != B:
            x_t = jnp.pad(x_t, ((0, Bp - B), (0, 0)))
        # TODO(synk): if this path ever becomes MXU/store-bound (v6e), pack 4
        # batch rows per 128-lane row with a block-diagonal replica of w_fused.
        slab = pl.pallas_call(
            kernel,
            out_shape=jax.ShapeDtypeStruct((Bp, C), jnp.float32),
            grid=(n_tiles,),
            in_specs=[
                pl.BlockSpec((_TB, ind), lambda i: (i, 0)),
                pl.BlockSpec((ind, C), lambda i: (0, 0)),
                pl.BlockSpec((1, C), lambda i: (0, 0)),
            ],
            out_specs=pl.BlockSpec((_TB, C), lambda i: (i, 0)),
            compiler_params=pltpu.CompilerParams(
                dimension_semantics=("parallel",),      # v7x dual-TC sharding
                vmem_limit_bytes=_VMEM_LIMIT_BYTES),
        )(x_t, w_t, b_fused)
        if Bp != B:
            slab = slab[:B]
    else:
        # Small/moderate B: grid-less, no software-pipeline prologue/epilogue;
        # full-array VMEM blocks.
        slab = pl.pallas_call(
            kernel,
            out_shape=jax.ShapeDtypeStruct((B, C), jnp.float32),
            in_specs=[
                pl.BlockSpec(memory_space=pltpu.MemorySpace.VMEM),
                pl.BlockSpec(memory_space=pltpu.MemorySpace.VMEM),
                pl.BlockSpec(memory_space=pltpu.MemorySpace.VMEM),
            ],
            out_specs=pl.BlockSpec(memory_space=pltpu.MemorySpace.VMEM),
        )(x, w_fused, b_fused)

    if K == 1:
        pi = jnp.ones((B, 1), jnp.float32)
        mean = slab[:, :1][:, None, :]        # torch.unsqueeze(mean, 1) -> [B,1,1]
        sigma = slab[:, 1:2][:, None, :]
    else:
        pi = slab[:, :K]
        mean = slab[:, K:2 * K]
        sigma = slab[:, 2 * K:]
    return pi, mean, sigma


def md_network_forward(x, weight, pi_weight, bias, *, n_components, isbias=1,
                       bf16_inputs=False):
    """Convenience wrapper (fuses params on the fly; prefer fuse_md_params +
    md_network_apply in a real training loop so fusion happens once)."""
    w_fused, b_fused = fuse_md_params(weight, pi_weight, bias,
                                      n_components=n_components, isbias=isbias)
    return md_network_apply(x, w_fused, b_fused, n_components=n_components,
                            isbias=isbias, bf16_inputs=bf16_inputs)


def _reference(x, weight, pi_weight, bias, *, n_components, isbias=1):
    K = n_components
    if K == 1:
        pi = jnp.ones((x.shape[0], 1), jnp.float32)
    else:
        pi = jax.nn.softmax(x @ pi_weight, axis=1)
    out = x @ weight
    if isbias:
        out = out + bias
    mean, sigma = out[:, :K], jnp.exp(out[:, K:])
    if K == 1:
        mean, sigma = mean[:, None, :], sigma[:, None, :]
    return pi, mean, sigma


def _check(B, IND, K, isbias, key, atol=1e-5, rtol=1e-5):
    kx, kw, kpw, kb = jax.random.split(key, 4)
    x = jax.random.normal(kx, (B, IND), jnp.float32)
    weight = jax.random.uniform(kw, (IND, 2 * K), jnp.float32)
    pi_weight = jax.random.uniform(kpw, (IND, K), jnp.float32)
    bias = jax.random.uniform(kb, (2 * K,), jnp.float32) if isbias else None

    w_fused, b_fused = fuse_md_params(weight, pi_weight, bias,
                                      n_components=K, isbias=isbias)
    pi, mean, sigma = md_network_apply(x, w_fused, b_fused,
                                       n_components=K, isbias=isbias)
    jax.block_until_ready((pi, mean, sigma))

    pi_r, mean_r, sigma_r = _reference(x, weight, pi_weight,
                                       bias if isbias else jnp.zeros((2 * K,)),
                                       n_components=K, isbias=isbias)
    assert pi.shape == pi_r.shape and mean.shape == mean_r.shape
    assert sigma.shape == sigma_r.shape
    assert jnp.allclose(pi, pi_r, atol=atol, rtol=rtol)
    assert jnp.allclose(mean, mean_r, atol=atol, rtol=rtol)
    assert jnp.allclose(sigma, sigma_r, atol=1e-4, rtol=1e-4)


if __name__ == "__main__":
    key = jax.random.PRNGKey(0)
    k1, k2, k3, k4 = jax.random.split(key, 4)

    # Small shapes consistent with the module: batch=8, ind=32, n_components=4.
    _check(B=8, IND=32, K=4, isbias=1, key=k1)
    # K == 1 path (pi matmul eliminated, mean/sigma get the extra unit axis).
    _check(B=8, IND=32, K=1, isbias=1, key=k2)
    # Moderate B now stays on the grid-less single-block path.
    _check(B=1024, IND=32, K=4, isbias=1, key=k3)
    # Large-B tiled path with a non-multiple-of-_TB batch (padded cdiv grid).
    _check(B=10000, IND=32, K=4, isbias=1, key=k4)

    print("KERNEL_OK")
</pallas_src>

<mosaic_0001>
module attributes {stable_mosaic.version = 11 : i64} {
  func.func @_md_fused_kernel(%arg0: memref<8x32xf32, #tpu.memory_space<vmem>>, %arg1: memref<32x12xf32, #tpu.memory_space<vmem>>, %arg2: memref<1x12xf32, #tpu.memory_space<vmem>>, %arg3: memref<8x12xf32, #tpu.memory_space<vmem>>) attributes {dimension_semantics = [], scalar_prefetch = 0 : i64, scratch_operands = 0 : i64, tpu.core_type = #tpu.core_type<tc>} {
    %c0 = arith.constant 0 : index
    %c0_0 = arith.constant 0 : index
    %0 = vector.load %arg0[%c0, %c0_0] : memref<8x32xf32, #tpu.memory_space<vmem>>, vector<8x32xf32>
    %c0_1 = arith.constant 0 : index
    %c0_2 = arith.constant 0 : index
    %1 = vector.load %arg1[%c0_1, %c0_2] : memref<32x12xf32, #tpu.memory_space<vmem>>, vector<32x12xf32>
    %cst = arith.constant dense<0.000000e+00> : vector<8x12xf32>
    %2 = tpu.matmul %0, %1, %cst {dimension_numbers = #tpu.dot_dimension_numbers<[1], [0], [0], [1], [0, 0, 1, 1], [], []>} : vector<8x32xf32>, vector<32x12xf32>, vector<8x12xf32> -> vector<8x12xf32>
    %c0_3 = arith.constant 0 : index
    %c0_4 = arith.constant 0 : index
    %3 = vector.load %arg2[%c0_3, %c0_4] : memref<1x12xf32, #tpu.memory_space<vmem>>, vector<1x12xf32>
    %4 = vector.broadcast %3 : vector<1x12xf32> to vector<8x12xf32>
    %5 = arith.addf %2, %4 : vector<8x12xf32>
    %6 = tpu.iota {dimensions = array<i32: 1>} : vector<8x12xi32>
    %c4_i32 = arith.constant 4 : i32
    %7 = vector.broadcast %c4_i32 : i32 to vector<8x12xi32>
    %8 = arith.cmpi slt, %6, %7 : vector<8x12xi32>
    %c8_i32 = arith.constant 8 : i32
    %9 = vector.broadcast %c8_i32 : i32 to vector<8x12xi32>
    %10 = arith.cmpi sge, %6, %9 : vector<8x12xi32>
    %cst_5 = arith.constant 0xFF800000 : f32
    %11 = vector.broadcast %cst_5 : f32 to vector<8x12xf32>
    %12 = arith.select %8, %5, %11 : vector<8x12xi1>, vector<8x12xf32>
    %cst_6 = arith.constant dense<0xFF800000> : vector<8xf32>
    %13 = vector.multi_reduction <maximumf>, %12, %cst_6 [1] : vector<8x12xf32> to vector<8xf32>
    %14 = vector.shape_cast %13 : vector<8xf32> to vector<8x1xf32>
    %15 = vector.broadcast %14 : vector<8x1xf32> to vector<8x12xf32>
    %16 = arith.subf %5, %15 : vector<8x12xf32>
    %cst_7 = arith.constant 0.000000e+00 : f32
    %17 = vector.broadcast %cst_7 : f32 to vector<8x12xf32>
    %18 = arith.select %10, %5, %17 : vector<8x12xi1>, vector<8x12xf32>
    %19 = arith.select %8, %16, %18 : vector<8x12xi1>, vector<8x12xf32>
    %20 = math.exp %19 : vector<8x12xf32>
    %cst_8 = arith.constant 0.000000e+00 : f32
    %21 = vector.broadcast %cst_8 : f32 to vector<8x12xf32>
    %22 = arith.select %8, %20, %21 : vector<8x12xi1>, vector<8x12xf32>
    %cst_9 = arith.constant dense<0.000000e+00> : vector<8xf32>
    %23 = vector.multi_reduction <add>, %22, %cst_9 [1] : vector<8x12xf32> to vector<8xf32>
    %24 = vector.shape_cast %23 : vector<8xf32> to vector<8x1xf32>
    %25 = vector.broadcast %24 : vector<8x1xf32> to vector<8x12xf32>
    %26 = arith.divf %20, %25 : vector<8x12xf32>
    %27 = arith.select %10, %20, %5 : vector<8x12xi1>, vector<8x12xf32>
    %28 = arith.select %8, %26, %27 : vector<8x12xi1>, vector<8x12xf32>
    %c0_10 = arith.constant 0 : index
    %c0_11 = arith.constant 0 : index
    %29 = vector.load %arg3[%c0_10, %c0_11] : memref<8x12xf32, #tpu.memory_space<vmem>>, vector<8x12xf32>
    tpu.vector_store %arg3[%c0_10, %c0_11], %28 {strides = array<i32>} : memref<8x12xf32, #tpu.memory_space<vmem>>, vector<8x12xf32>,
    return
  }
}

</mosaic_0001>

<llo_original>
// kernel: tpu_custom_call.1
$region0: #{tpu_custom_call.1}
  #allocation0 [shape = 'u32[]', space=smem, size = 0x4, offset = 0x4, fixed_abs, tag = 'smem constant byte address 0x4 - core index']
  #allocation1 [shape = 'u32[72,128]{1,0:T(1,128)}', space=vmem, size = 0x9000, scoped, tag = 'internal scratch']
  %s0 = inlined_call_operand.vmem [shape: f32[8,32], index: 0, kind: input, shape index: {}]
  %s1 = inlined_call_operand.vmem [shape: f32[32,12], index: 1, kind: input, shape index: {}]
  %s2 = inlined_call_operand.vmem [shape: f32[1,12], index: 2, kind: input, shape index: {}]
  %s3 = inlined_call_operand.hbm [shape: f32[8,12], index: 3, kind: output, shape index: {}]
  %s4 = sld [smem:[#allocation0]]
  $region22: #{tpu_custom_call.1} parent=0
    _
  %s6 = ssub.s32 1, %s4
  %s7 = scalar_select 0, %s6, %s4
  $region1: #{tpu_custom_call.1} parent=0
    #allocation2 [shape = 'u8[4096]{0}', space=vmem, size = 0x1000, scoped, tag = 'output window, operand 0, single buffered']
    #allocation3 [shape = 's32[1]{0}', space=sflag, size = 0x4, scoped, tag = 'scoped memory for tpu_custom_call.1']
    %8 = vsyncpa [#allocation3], 0
    // Predicated region
    $region2: #{tpu_custom_call.1} parent=1 // pred_check
      _
    $region3: #{tpu_custom_call.1} parent=1 // pred_check_branch
      %10 = sbr.rel (0) target = $region5
    $region4: #{tpu_custom_call.1} parent=1 // pred_region
      _
    $region5: #{tpu_custom_call.1} parent=1 // pred_fallthru
      _
    // Predicated region
    $region6: #{tpu_custom_call.1} parent=1 // pred_check
      _
    $region7: #{tpu_custom_call.1} parent=1 // pred_check_branch
      %12 = sbr.rel (0) target = $region9
    $region8: #{tpu_custom_call.1} parent=1 // pred_region
      _
    $region9: #{tpu_custom_call.1} parent=1 // pred_fallthru
      _
    // Predicated region
    $region10: #{tpu_custom_call.1} parent=1 // pred_check
      _
    $region11: #{tpu_custom_call.1} parent=1 // pred_check_branch
      %14 = sbr.rel (0) target = $region13
    $region12: #{tpu_custom_call.1} parent=1 // pred_region
      _
    $region13: #{tpu_custom_call.1} parent=1 // pred_fallthru
      _
    %v15 = vld [vmem:[%s0] sm:$0xff]
    %v16 = vld [vmem:[%s1] sm:$0xff]
    %v17 = vld [vmem:[%s1 + $0x8] sm:$0xff]
    %v18 = vld [vmem:[%s1 + $0x10] sm:$0xff]
    %v19 = vld [vmem:[%s1 + $0x18] sm:$0xff]
    %v20 = vld [vmem:[%s2] sm:$0x1]
    %v22 = vperm.slane %v20, 0
    %vm24 = vcmask 261120
    %v26 = vsel %vm24, %v15, 0
    %28 = vmatpush.msra.mxu0 0.0
    %29 = vmatpush.msra.mxu0 0.0
    %30 = vmatpush.msra.mxu0 0.0
    %31 = vmatpush.msra.mxu0 0.0
    %32 = vmatpush.msra.mxu0 0.0
    %33 = vmatpush.msra.mxu0 0.0
    %34 = vmatpush.msra.mxu0 0.0
    %35 = vmatpush.msra.mxu0 0.0
    %36 = vmatpush.msra.mxu0 0.0
    %37 = vmatpush.msra.mxu0 0.0
    %38 = vmatpush.msra.mxu0 0.0
    %39 = vmatpush.msra.mxu0 0.0
    %40 = vmatpush.msra.mxu0 %v19
    %41 = vmatpush.msra.mxu0 %v18
    %42 = vmatpush.msra.mxu0 %v17
    %43 = vmatpush.msra.mxu0 %v16
    %44 = vmatmul.f32.gmra.mxu0 %v26
    %v45 = vpop.f32.mrf.mxu0
    %v46 = vadd.f32 %v22, %v45
    %47 = vdwg.mxu0
    %v48 = vlaneseq
    %v49 = vand.u32 %v48, 127
    %vm50 = vcmp.lt.s32.totalorder %v49, 4
    %vm51 = vcmp.ge.s32.totalorder %v49, 8
    %v52 = vsel %vm50, %v46, -inf
    %vm53 = vcmask 97280
    %v54 = vsel %vm53, %v52, -inf
    %55 = vmax.xlane.f32.xlu0 %v54
    %v56 = vpop.xlane.xlu0 %55
    %v57 = vsub.f32 %v46, %v56
    %v58 = vsel %vm51, %v46, 0.0
    %v59 = vsel %vm50, %v57, %v58
    %v60 = vmul.f32 %v59, 1.442695
    %v61 = vpow.pop %v60
    %v62 = vsel %vm50, %v61, 0.0
    %v63 = vsel %vm53, %v62, 0.0
    %64 = vadd.xlane.f32.xlu0 %v63
    %v65 = vpop.xlane.xlu0 %64
    %v66 = vrcp.pop %v65
    %v67 = vmul.f32 %v65, %v66
    %v68 = vsub.f32 1.0, %v67
    %v69 = vmul.f32 %v66, %v68
    %v70 = vadd.f32 %v66, %v69
    %vm71 = vweird.f32 %v65
    %vm72 = vweird.f32 %v66
    %vm73 = vmor %vm71, %vm72
    %v74 = vsel %vm73, %v66, %v70
    %v75 = vand.u32 2147483647, %v65
    %vm76 = vcmp.eq.f32.partialorder %v75, 8.507059e+37
    %v77 = vand.u32 %v65, 2147483648
    %v78 = vor.u32 1.1754944e-38, %v77
    %v79 = vsel %vm76, %v78, %v74
    %v80 = vmul.f32 %v61, %v79
    %v81 = vsel %vm51, %v61, %v46
    %v82 = vsel %vm50, %v80, %v81
    %83 = vst.msk [vmem:[#allocation2] sm:$0xff] %vm53, %v82
    // Predicated region
    $region14: #{tpu_custom_call.1} parent=1 // pred_check
      _
    $region15: #{tpu_custom_call.1} parent=1 // pred_check_branch
      %85 = sbr.rel (0) target = $region17
    $region16: #{tpu_custom_call.1} parent=1 // pred_region
      %87 = vsyncadd [#allocation3], 0
      %s89 = sshll.u32 [#allocation2], 4
      %s90 = int_to_ptr.vmem [resolvable:$true] %s89
      %s91 = sshll.u32 %s3, 4
      %s92 = int_to_ptr.hbm [resolvable:$true] %s91
      %94 = dma.vmem_to_hbm [thread:$0]  %s90, 128, %s92, [#allocation3]
    $region17: #{tpu_custom_call.1} parent=1 // pred_fallthru
      _
    // Predicated region
    $region18: #{tpu_custom_call.1} parent=1 // pred_check
      _
    $region19: #{tpu_custom_call.1} parent=1 // pred_check_branch
      %96 = sbr.rel (0) target = $region21
    $region20: #{tpu_custom_call.1} parent=1 // pred_region
      %98 = dma.done [#allocation3], 128
    $region21: #{tpu_custom_call.1} parent=1 // pred_fallthru
      _
    %99 = vsyncpa [#allocation3], 1

</llo_original>
